<compile_context>
chip_gen: v5e
topology: v5e:2x2
jax: 0.10.0
libtpu: 0.0.40
codegen_flags: <defaults>
</compile_context>

<pallas_src>
import jax
import jax.numpy as jnp
import numpy as np
from jax.experimental import pallas as pl
from jax.experimental.pallas import tpu as pltpu


def _round_up(v, m):
    return ((v + m - 1) // m) * m


def rffnet_kernel(x_ref, omega_ref, unif_ref, w_ref, out_ref, acc_ref):
    # x_ref:     (TN, d_in)     — one batch tile, resident across the k axis
    # omega_ref: (d_in, CK)     — d_rff chunk of relevance-scaled omega
    # unif_ref:  (1, CK)        — matching chunk of the phase shift (f32)
    # w_ref:     (CK, d_out_p)  — matching chunk of the transposed linear weight
    # out_ref:   (TN, d_out_p)  — lane-dense output tile (written at k==last)
    # acc_ref:   (TN, d_out_p)  — f32 accumulator scratch (persists across k)
    k = pl.program_id(1)

    @pl.when(k == 0)
    def _init():
        acc_ref[...] = jnp.zeros_like(acc_ref)

    z = jnp.dot(x_ref[...], omega_ref[...],
                preferred_element_type=jnp.float32)            # (TN, CK) f32 MXU
    feats = jnp.cos(z + unif_ref[...])                         # f32 VPU/EUP
    acc_ref[...] += jnp.dot(feats.astype(w_ref.dtype), w_ref[...],
                            preferred_element_type=jnp.float32)

    @pl.when(k == pl.num_programs(1) - 1)
    def _finalize():
        out_ref[...] = acc_ref[...].astype(out_ref.dtype)


def rffnet_forward(x, relevances, omega, unif, w, *, tn=1024, ck=512,
                   weights_dtype=None, vmem_budget_bytes=40 << 20):
    """RFFNet forward.

    x:          (N, d_in)
    relevances: (d_in,)        — RFFLayer parameter
    omega:      (d_in, d_rff)  — RFFLayer _omega_sample buffer
    unif:       (d_rff,)       — RFFLayer _unif_sample buffer
    w:          (d_out, d_rff) — nn.Linear(d_rff, d_out, bias=False) weight
    weights_dtype: optional dtype for x/omega/W fed to the MXU
                   (e.g. jnp.bfloat16 on v6e/v7x; cos/add/acc stay f32)
    returns     (N, d_out)
    """
    N, d_in = x.shape
    d_rff = omega.shape[1]
    d_out = w.shape[0]
    out_dtype = x.dtype
    wdt = x.dtype if weights_dtype is None else weights_dtype

    # ---- one-time weight-side preprocessing (outside the kernel) ------------
    # Fold relevances into omega:  (x * r) @ omega == x @ (r[:, None] * omega)
    omega_s = (relevances[:, None].astype(jnp.float32)
               * omega.astype(jnp.float32))                     # (d_in, d_rff)

    # d_rff chunk size: multiple of 128 lanes, no larger than padded d_rff.
    d_rff_128 = _round_up(d_rff, 128)
    ck = max(128, min((ck // 128) * 128, d_rff_128))
    d_out_p = max(128, _round_up(d_out, 128))

    # ---- batch tiling --------------------------------------------------------
    n_ceil8 = _round_up(max(N, 1), 8)
    # Cap tn so there are >= 2 batch tiles whenever N allows: the "parallel"
    # axis can then shard across v7x's two TensorCores (free on v5e/v6e).
    tn_cap = _round_up(n_ceil8 // 2, 8) if n_ceil8 >= 16 else n_ceil8
    tn = max(8, min(tn, tn_cap))

    # ---- fit (tn, ck) against an explicit VMEM budget ------------------------
    w_isz = np.dtype(wdt).itemsize
    o_isz = np.dtype(out_dtype).itemsize

    def est_vmem(tn_, ck_):
        return (2 * tn_ * d_in * w_isz          # x tiles (double-buffered)
                + 2 * d_in * ck_ * w_isz        # omega chunks
                + 2 * ck_ * 4                   # unif chunks (f32)
                + 2 * ck_ * d_out_p * w_isz     # W^T chunks
                + 2 * tn_ * d_out_p * o_isz     # out tiles
                + tn_ * d_out_p * 4             # f32 accumulator scratch
                + 2 * tn_ * ck_ * 4)            # z / feats temporaries

    while est_vmem(tn, ck) > vmem_budget_bytes:
        if tn > 256:
            tn = max(256, ((tn // 2) // 8) * 8)
        elif ck > 128:
            ck = max(128, ((ck // 2) // 128) * 128)
        else:
            break

    d_rff_p = _round_up(d_rff, ck)              # multiple of ck (and of 128)
    n_pad = _round_up(max(N, 1), tn)
    grid_n = n_pad // tn
    grid_k = d_rff_p // ck

    # ---- padded / cast operands ----------------------------------------------
    # Padded d_rff columns: z = 0 and unif_pad = 0 -> cos = 1, but the matching
    # W rows are zero, so they contribute nothing (exact).
    omega_p = jnp.zeros((d_in, d_rff_p), jnp.float32).at[:, :d_rff].set(omega_s)
    omega_p = omega_p.astype(wdt)
    unif_p = jnp.zeros((1, d_rff_p), jnp.float32).at[:, :d_rff].set(
        unif.astype(jnp.float32).reshape(1, d_rff))
    w_t = jnp.zeros((d_rff_p, d_out_p), jnp.float32).at[:d_rff, :d_out].set(
        w.astype(jnp.float32).T)
    w_t = w_t.astype(wdt)

    x_p = x.astype(wdt)
    if n_pad != N:
        x_p = jnp.pad(x_p, ((0, n_pad - N), (0, 0)))

    # ---- advisory cost estimate ----------------------------------------------
    weight_streams = grid_n if grid_k > 1 else 1   # chunks re-streamed per batch tile
    cost = pl.CostEstimate(
        flops=2 * n_pad * d_rff_p * (d_in + d_out_p),
        transcendentals=n_pad * d_rff_p,
        bytes_accessed=(x_p.size * w_isz
                        + weight_streams * (omega_p.size + w_t.size) * w_isz
                        + weight_streams * unif_p.size * 4
                        + n_pad * d_out_p * o_isz),
    )

    # Scoped VMEM: default (16/32 MiB) is too small for resident chunks + tiles
    # at realistic d_rff/d_out; leave headroom below v7x's 64 MiB physical cap.
    vmem_limit = int(min(max(est_vmem(tn, ck) * 3 // 2 + (8 << 20), 32 << 20),
                         56 << 20))

    out_p = pl.pallas_call(
        rffnet_kernel,
        out_shape=jax.ShapeDtypeStruct((n_pad, d_out_p), out_dtype),
        grid_spec=pltpu.PrefetchScalarGridSpec(
            num_scalar_prefetch=0,
            grid=(grid_n, grid_k),                               # k = reduction, last
            in_specs=[
                pl.BlockSpec((tn, d_in), lambda i, k: (i, 0)),       # x tile (reused over k)
                pl.BlockSpec((d_in, ck), lambda i, k: (0, k)),       # omega chunk
                pl.BlockSpec((1, ck), lambda i, k: (0, k)),          # unif chunk
                pl.BlockSpec((ck, d_out_p), lambda i, k: (k, 0)),    # W^T chunk
            ],
            out_specs=pl.BlockSpec((tn, d_out_p), lambda i, k: (i, 0)),
            scratch_shapes=[pltpu.VMEM((tn, d_out_p), jnp.float32)],
        ),
        compiler_params=pltpu.CompilerParams(
            dimension_semantics=("parallel", "arbitrary"),
            vmem_limit_bytes=vmem_limit),
        cost_estimate=cost,
    )(x_p, omega_p, unif_p, w_t)

    # Strip batch padding and output lane padding.
    return out_p[:N, :d_out]


def rffnet_reference(x, relevances, omega, unif, w):
    feats = jnp.cos((x * relevances[None, :]) @ omega + unif[None, :])
    return feats @ w.T


if __name__ == "__main__":
    key = jax.random.PRNGKey(0)
    k_x, k_omega, k_unif, k_w, k_x2, k_o2, k_u2, k_w2 = jax.random.split(key, 8)

    # --- test 1: dims = (in, rff, out) = (16, 128, 32), 8 samples -------------
    dims = (16, 128, 32)
    n = 8
    x = jax.random.normal(k_x, (n, dims[0]), dtype=jnp.float32)
    # PyTorch reset_parameters() defaults relevances to a constant (0.0); use
    # 1.0 so the full compute path is exercised rather than zeroed.
    relevances = jnp.full((dims[0],), 1.0, dtype=jnp.float32)
    omega = jax.random.normal(k_omega, (dims[0], dims[1]), dtype=jnp.float32)
    unif = jax.random.uniform(k_unif, (dims[1],), dtype=jnp.float32) * 2.0 * np.pi
    bound = 1.0 / np.sqrt(dims[1])
    w = jax.random.uniform(k_w, (dims[2], dims[1]), dtype=jnp.float32,
                           minval=-bound, maxval=bound)

    out = jax.block_until_ready(rffnet_forward(x, relevances, omega, unif, w))
    ref = rffnet_reference(x, relevances, omega, unif, w)
    np.testing.assert_allclose(np.asarray(out), np.asarray(ref),
                               rtol=1e-5, atol=1e-5)

    # --- test 2: exercises the d_rff reduction axis (grid_k > 1), multiple
    # batch tiles (grid_n > 1) and padding on every axis.
    dims2 = (16, 384, 20)
    n2 = 36
    x2 = jax.random.normal(k_x2, (n2, dims2[0]), dtype=jnp.float32)
    rel2 = jnp.full((dims2[0],), 1.0, dtype=jnp.float32)
    omega2 = jax.random.normal(k_o2, (dims2[0], dims2[1]), dtype=jnp.float32)
    unif2 = jax.random.uniform(k_u2, (dims2[1],), dtype=jnp.float32) * 2.0 * np.pi
    bound2 = 1.0 / np.sqrt(dims2[1])
    w2 = jax.random.uniform(k_w2, (dims2[2], dims2[1]), dtype=jnp.float32,
                            minval=-bound2, maxval=bound2)

    out2 = jax.block_until_ready(
        rffnet_forward(x2, rel2, omega2, unif2, w2, ck=128))
    ref2 = rffnet_reference(x2, rel2, omega2, unif2, w2)
    np.testing.assert_allclose(np.asarray(out2), np.asarray(ref2),
                               rtol=1e-5, atol=1e-5)

    print("KERNEL_OK")
</pallas_src>

<mosaic_0001>
module attributes {stable_mosaic.version = 11 : i64} {
  func.func @rffnet_kernel(%arg0: i32, %arg1: i32, %arg2: memref<8x16xf32, #tpu.memory_space<vmem>>, %arg3: memref<16x128xf32, #tpu.memory_space<vmem>>, %arg4: memref<1x128xf32, #tpu.memory_space<vmem>>, %arg5: memref<128x128xf32, #tpu.memory_space<vmem>>, %arg6: memref<8x128xf32, #tpu.memory_space<vmem>>, %arg7: memref<8x128xf32, #tpu.memory_space<vmem>>) attributes {dimension_semantics = [#tpu.dimension_semantics<parallel>, #tpu.dimension_semantics<arbitrary>], iteration_bounds = array<i64: 1, 1>, scalar_prefetch = 0 : i64, scratch_operands = 1 : i64, tpu.core_type = #tpu.core_type<tc>, window_params = [{transform_indices = @transform_0, window_bounds = array<i64: 8, 16>}, {transform_indices = @transform_1, window_bounds = array<i64: 16, 128>}, {transform_indices = @transform_2, window_bounds = array<i64: 1, 128>}, {transform_indices = @transform_3, window_bounds = array<i64: 128, 128>}, {transform_indices = @transform_4, window_bounds = array<i64: 8, 128>}]} {
    %c0_i32 = arith.constant 0 : i32
    %0 = arith.cmpi eq, %arg1, %c0_i32 : i32
    %1 = arith.extui %0 : i1 to i32
    %c0_i32_0 = arith.constant 0 : i32
    %2 = arith.cmpi ne, %1, %c0_i32_0 : i32
    scf.if %2 {
      %cst_15 = arith.constant 0.000000e+00 : f32
      %18 = vector.broadcast %cst_15 : f32 to vector<8x128xf32>
      %c0_16 = arith.constant 0 : index
      %c0_17 = arith.constant 0 : index
      %19 = vector.load %arg7[%c0_16, %c0_17] : memref<8x128xf32, #tpu.memory_space<vmem>>, vector<8x128xf32>
      tpu.vector_store %arg7[%c0_16, %c0_17], %18 {strides = array<i32>} : memref<8x128xf32, #tpu.memory_space<vmem>>, vector<8x128xf32>,
    } else {
    }
    %c0 = arith.constant 0 : index
    %c0_1 = arith.constant 0 : index
    %3 = vector.load %arg2[%c0, %c0_1] : memref<8x16xf32, #tpu.memory_space<vmem>>, vector<8x16xf32>
    %c0_2 = arith.constant 0 : index
    %c0_3 = arith.constant 0 : index
    %4 = vector.load %arg3[%c0_2, %c0_3] : memref<16x128xf32, #tpu.memory_space<vmem>>, vector<16x128xf32>
    %cst = arith.constant dense<0.000000e+00> : vector<8x128xf32>
    %5 = tpu.matmul %3, %4, %cst {dimension_numbers = #tpu.dot_dimension_numbers<[1], [0], [0], [1], [0, 0, 1, 1], [], []>} : vector<8x16xf32>, vector<16x128xf32>, vector<8x128xf32> -> vector<8x128xf32>
    %c0_4 = arith.constant 0 : index
    %c0_5 = arith.constant 0 : index
    %6 = vector.load %arg4[%c0_4, %c0_5] : memref<1x128xf32, #tpu.memory_space<vmem>>, vector<1x128xf32>
    %7 = vector.broadcast %6 : vector<1x128xf32> to vector<8x128xf32>
    %8 = arith.addf %5, %7 : vector<8x128xf32>
    %9 = math.cos %8 : vector<8x128xf32>
    %c0_6 = arith.constant 0 : index
    %c0_7 = arith.constant 0 : index
    %10 = vector.load %arg7[%c0_6, %c0_7] : memref<8x128xf32, #tpu.memory_space<vmem>>, vector<8x128xf32>
    %c0_8 = arith.constant 0 : index
    %c0_9 = arith.constant 0 : index
    %11 = vector.load %arg5[%c0_8, %c0_9] : memref<128x128xf32, #tpu.memory_space<vmem>>, vector<128x128xf32>
    %cst_10 = arith.constant dense<0.000000e+00> : vector<8x128xf32>
    %12 = tpu.matmul %9, %11, %cst_10 {dimension_numbers = #tpu.dot_dimension_numbers<[1], [0], [0], [1], [0, 0, 1, 1], [], []>} : vector<8x128xf32>, vector<128x128xf32>, vector<8x128xf32> -> vector<8x128xf32>
    %13 = arith.addf %10, %12 : vector<8x128xf32>
    %c0_11 = arith.constant 0 : index
    %c0_12 = arith.constant 0 : index
    %14 = vector.load %arg7[%c0_11, %c0_12] : memref<8x128xf32, #tpu.memory_space<vmem>>, vector<8x128xf32>
    tpu.vector_store %arg7[%c0_11, %c0_12], %13 {strides = array<i32>} : memref<8x128xf32, #tpu.memory_space<vmem>>, vector<8x128xf32>,
    %c0_i32_13 = arith.constant 0 : i32
    %15 = arith.cmpi eq, %arg1, %c0_i32_13 : i32
    %16 = arith.extui %15 : i1 to i32
    %c0_i32_14 = arith.constant 0 : i32
    %17 = arith.cmpi ne, %16, %c0_i32_14 : i32
    scf.if %17 {
      %c0_15 = arith.constant 0 : index
      %c0_16 = arith.constant 0 : index
      %18 = vector.load %arg7[%c0_15, %c0_16] : memref<8x128xf32, #tpu.memory_space<vmem>>, vector<8x128xf32>
      %c0_17 = arith.constant 0 : index
      %c0_18 = arith.constant 0 : index
      %19 = vector.load %arg6[%c0_17, %c0_18] : memref<8x128xf32, #tpu.memory_space<vmem>>, vector<8x128xf32>
      tpu.vector_store %arg6[%c0_17, %c0_18], %18 {strides = array<i32>} : memref<8x128xf32, #tpu.memory_space<vmem>>, vector<8x128xf32>,
    } else {
    }
    return
  }
  func.func @transform_0(%arg0: i32, %arg1: i32) -> (i32, i32) {
    %c0_i32 = arith.constant 0 : i32
    %c0_i32_0 = arith.constant 0 : i32
    return %arg0, %c0_i32 : i32, i32
  }
  func.func @transform_1(%arg0: i32, %arg1: i32) -> (i32, i32) {
    %c0_i32 = arith.constant 0 : i32
    %c0_i32_0 = arith.constant 0 : i32
    return %c0_i32, %arg1 : i32, i32
  }
  func.func @transform_2(%arg0: i32, %arg1: i32) -> (i32, i32) {
    %c0_i32 = arith.constant 0 : i32
    %c0_i32_0 = arith.constant 0 : i32
    return %c0_i32, %arg1 : i32, i32
  }
  func.func @transform_3(%arg0: i32, %arg1: i32) -> (i32, i32) {
    %c0_i32 = arith.constant 0 : i32
    %c0_i32_0 = arith.constant 0 : i32
    return %arg1, %c0_i32 : i32, i32
  }
  func.func @transform_4(%arg0: i32, %arg1: i32) -> (i32, i32) {
    %c0_i32 = arith.constant 0 : i32
    %c0_i32_0 = arith.constant 0 : i32
    return %arg0, %c0_i32 : i32, i32
  }
}

</mosaic_0001>

<llo_original>
// kernel: tpu_custom_call.1
$region0: #{tpu_custom_call.1}
  #allocation0 [shape = 'u32[]', space=smem, size = 0x4, offset = 0x4, fixed_abs, tag = 'smem constant byte address 0x4 - core index']
  #allocation1 [shape = 'u32[72,128]{1,0:T(1,128)}', space=vmem, size = 0x9000, scoped, tag = 'internal scratch']
  #allocation2 [shape = 'f32[8,128]{1,0:T(8,128)}', space=vmem, size = 0x1000, scoped, tag = 'scratch operand']
  %s0 = inlined_call_operand.hbm [shape: f32[8,16], index: 0, kind: input, shape index: {}]
  %s1 = inlined_call_operand.hbm [shape: f32[16,128], index: 1, kind: input, shape index: {}]
  %s2 = inlined_call_operand.vmem [shape: f32[1,128], index: 2, kind: input, shape index: {}]
  %s3 = inlined_call_operand.hbm [shape: f32[128,128], index: 3, kind: input, shape index: {}]
  %s4 = inlined_call_operand.hbm [shape: f32[8,128], index: 4, kind: output, shape index: {}]
  %s5 = sld [smem:[#allocation0]]
  $region46: #{tpu_custom_call.1} parent=0
    _
  %s7 = ssub.s32 1, %s5
  %s8 = scalar_select 0, %s7, %s5
  $region1: #{tpu_custom_call.1} parent=0
    #allocation3 [shape = 'u8[4096]{0}', space=vmem, size = 0x1000, scoped, tag = 'input window, operand 0, single buffered']
    #allocation4 [shape = 's32[1]{0}', space=sflag, size = 0x4, scoped, tag = 'scoped memory for tpu_custom_call.1']
    #allocation5 [shape = 's32[1]{0}', space=sflag, size = 0x4, scoped, tag = 'scoped memory for tpu_custom_call.1']
    #allocation6 [shape = 'u8[8192]{0}', space=vmem, size = 0x2000, scoped, tag = 'input window, operand 1, single buffered']
    #allocation7 [shape = 's32[1]{0}', space=sflag, size = 0x4, scoped, tag = 'scoped memory for tpu_custom_call.1']
    #allocation8 [shape = 'u8[65536]{0}', space=vmem, size = 0x10000, scoped, tag = 'input window, operand 3, single buffered']
    #allocation9 [shape = 'u8[4096]{0}', space=vmem, size = 0x1000, scoped, tag = 'output window, operand 0, single buffered']
    %9 = vsyncpa [#allocation4], 0
    %10 = vsyncpa [#allocation7], 0
    %11 = vsyncpa [#allocation5], 0
    // Predicated region
    $region2: #{tpu_custom_call.1} parent=1 // pred_check
      _
    $region3: #{tpu_custom_call.1} parent=1 // pred_check_branch
      %13 = sbr.rel (0) target = $region5
    $region4: #{tpu_custom_call.1} parent=1 // pred_region
      %15 = vsyncadd [#allocation4], 0
      %s17 = sshll.u32 %s0, 4
      %s18 = int_to_ptr.hbm [resolvable:$true] %s17
      %s19 = sshll.u32 [#allocation3], 4
      %s20 = int_to_ptr.vmem [resolvable:$true] %s19
      %22 = dma.hbm_to_vmem [thread:$0]  %s18, 128, %s20, [#allocation4]
    $region5: #{tpu_custom_call.1} parent=1 // pred_fallthru
      _
    // Predicated region
    $region6: #{tpu_custom_call.1} parent=1 // pred_check
      _
    $region7: #{tpu_custom_call.1} parent=1 // pred_check_branch
      %24 = sbr.rel (0) target = $region9
    $region8: #{tpu_custom_call.1} parent=1 // pred_region
      %26 = vsyncadd [#allocation7], 0
      %s27 = sshll.u32 %s1, 4
      %s28 = int_to_ptr.hbm [resolvable:$true] %s27
      %s29 = sshll.u32 [#allocation6], 4
      %s30 = int_to_ptr.vmem [resolvable:$true] %s29
      %35 = dma.hbm_to_vmem [thread:$0]  %s28, 256, %s30, [#allocation7], 128, 128, 8
    $region9: #{tpu_custom_call.1} parent=1 // pred_fallthru
      _
    // Predicated region
    $region10: #{tpu_custom_call.1} parent=1 // pred_check
      _
    $region11: #{tpu_custom_call.1} parent=1 // pred_check_branch
      %37 = sbr.rel (0) target = $region13
    $region12: #{tpu_custom_call.1} parent=1 // pred_region
      _
    $region13: #{tpu_custom_call.1} parent=1 // pred_fallthru
      _
    // Predicated region
    $region14: #{tpu_custom_call.1} parent=1 // pred_check
      _
    $region15: #{tpu_custom_call.1} parent=1 // pred_check_branch
      %39 = sbr.rel (0) target = $region17
    $region16: #{tpu_custom_call.1} parent=1 // pred_region
      %41 = vsyncadd [#allocation7], 0
      %s42 = sshll.u32 %s3, 4
      %s43 = int_to_ptr.hbm [resolvable:$true] %s42
      %s44 = sshll.u32 [#allocation8], 4
      %s45 = int_to_ptr.vmem [resolvable:$true] %s44
      %50 = dma.hbm_to_vmem [thread:$0]  %s43, 2048, %s45, [#allocation7], 128, 128, 8
    $region17: #{tpu_custom_call.1} parent=1 // pred_fallthru
      _
    // Predicated region
    $region18: #{tpu_custom_call.1} parent=1 // pred_check
      _
    $region19: #{tpu_custom_call.1} parent=1 // pred_check_branch
      %52 = sbr.rel (0) target = $region21
    $region20: #{tpu_custom_call.1} parent=1 // pred_region
      %54 = dma.done [#allocation4], 128
    $region21: #{tpu_custom_call.1} parent=1 // pred_fallthru
      _
    // Predicated region
    $region22: #{tpu_custom_call.1} parent=1 // pred_check
      _
    $region23: #{tpu_custom_call.1} parent=1 // pred_check_branch
      %56 = sbr.rel (0) target = $region25
    $region24: #{tpu_custom_call.1} parent=1 // pred_region
      %58 = dma.done [#allocation7], 256
    $region25: #{tpu_custom_call.1} parent=1 // pred_fallthru
      _
    // Predicated region
    $region26: #{tpu_custom_call.1} parent=1 // pred_check
      _
    $region27: #{tpu_custom_call.1} parent=1 // pred_check_branch
      %60 = sbr.rel (0) target = $region29
    $region28: #{tpu_custom_call.1} parent=1 // pred_region
      %62 = dma.done [#allocation7], 2048
    $region29: #{tpu_custom_call.1} parent=1 // pred_fallthru
      _
    %p63 = scmp.eq.s32.totalorder 0, 0
    // Predicated region
    $region30: #{tpu_custom_call.1} parent=1 // pred_check
      %p64 = pneg %p63
    $region31: #{tpu_custom_call.1} parent=1 // pred_check_branch
      %66 = sbr.rel (%p64) target = $region33
    $region32: #{tpu_custom_call.1} parent=1 // pred_region
      %67 = vst [vmem:[#allocation2] sm:$0xff] 0.0
    $region33: #{tpu_custom_call.1} parent=1 // pred_fallthru
      _
    %v68 = vld [vmem:[#allocation3] sm:$0xff]
    %v69 = vld [vmem:[#allocation6] sm:$0xff]
    %v70 = vld [vmem:[#allocation6 + $0x8] sm:$0xff]
    %v71 = vld [vmem:[%s2] sm:$0x1]
    %v73 = vperm.slane %v71, 0
    %vm75 = vcmask 130048
    %v77 = vsel %vm75, %v68, 0
    %79 = vmatpush.msra.mxu0 0.0
    %80 = vmatpush.msra.mxu0 0.0
    %81 = vmatpush.msra.mxu0 0.0
    %82 = vmatpush.msra.mxu0 0.0
    %83 = vmatpush.msra.mxu0 0.0
    %84 = vmatpush.msra.mxu0 0.0
    %85 = vmatpush.msra.mxu0 0.0
    %86 = vmatpush.msra.mxu0 0.0
    %87 = vmatpush.msra.mxu0 0.0
    %88 = vmatpush.msra.mxu0 0.0
    %89 = vmatpush.msra.mxu0 0.0
    %90 = vmatpush.msra.mxu0 0.0
    %91 = vmatpush.msra.mxu0 0.0
    %92 = vmatpush.msra.mxu0 0.0
    %93 = vmatpush.msra.mxu0 %v70
    %94 = vmatpush.msra.mxu0 %v69
    %95 = vmatmul.f32.gmra.mxu0 %v77
    %v96 = vpop.f32.mrf.mxu0
    %v97 = vadd.f32 %v73, %v96
    %98 = vdwg.mxu0
    %v99 = vand.u32 2147483647, %v97
    %vm100 = vcmp.le.f32.partialorder %v99, 0.7853982
    %vm101 = vcmp.lt.s32.totalorder %v97, 0
    %v102 = vand.u32 %v97, 2139095040
    %v103 = vshrl.u32 %v102, 23
    %v104 = vsub.s32 %v103, 127
    %v105 = vand.u32 2147483647, %v97
    %v106 = vand.u32 %v105, 8388607
    %v107 = vor.u32 %v106, 8388608
    %v108 = vsub.s32 0, %v107
    %v109 = vadd.s32 %v104, 1
    %vm110 = vcmp.gt.s32.totalorder %v109, 0
    %v111 = vsel %vm110, %v109, 0
    %v112 = vshrl.u32 %v111, 5
    %v113 = vand.u32 %v111, 31
    %v114 = vsub.s32 32, %v113
    %v115 = vshrl.u32 683565275, %v114
    %v116 = vshll.u32 683565275, %v113
    %v117 = vshrl.u32 2475754826, %v114
    %v118 = vor.u32 %v116, %v117
    %v119 = vshll.u32 2475754826, %v113
    %v120 = vshrl.u32 2131351028, %v114
    %v121 = vor.u32 %v119, %v120
    %v122 = vshll.u32 2131351028, %v113
    %v123 = vshrl.u32 2102212464, %v114
    %v124 = vor.u32 %v122, %v123
    %v125 = vshll.u32 2102212464, %v113
    %v126 = vshrl.u32 920167782, %v114
    %v127 = vor.u32 %v125, %v126
    %v128 = vshll.u32 920167782, %v113
    %v129 = vshrl.u32 1326507024, %v114
    %v130 = vor.u32 %v128, %v129
    %vm131 = vcmp.lt.s32.totalorder %v112, 1
    %vm132 = vcmp.lt.s32.totalorder %v112, 2
    %vm133 = vcmp.lt.s32.totalorder %v112, 3
    %vm134 = vcmp.lt.s32.totalorder %v112, 4
    %v135 = vsel %vm131, %v115, %v118
    %v136 = vsel %vm134, %v124, 2102212464
    %v137 = vsel %vm133, %v121, %v136
    %v138 = vsel %vm132, %v135, %v137
    %v139 = vsel %vm131, %v118, %v121
    %v140 = vsel %vm134, %v127, 920167782
    %v141 = vsel %vm133, %v124, %v140
    %v142 = vsel %vm132, %v139, %v141
    %v143 = vsel %vm131, %v121, %v124
    %v144 = vsel %vm134, %v130, 1326507024
    %v145 = vsel %vm133, %v127, %v144
    %v146 = vsel %vm132, %v143, %v145
    %v147 = vshll.u32 %v107, 8
    %v148 = vand.u32 %v147, 65535
    %v149 = vshrl.u32 %v147, 16
    %v150 = vand.u32 %v146, 65535
    %v151 = vshrl.u32 %v146, 16
    %v152 = vmul.u32 %v148, %v150
    %v153 = vmul.u32 %v148, %v151
    %v154 = vmul.u32 %v149, %v150
    %v155 = vmul.u32 %v149, %v151
    %v156 = vshll.u32 %v153, 16
    %v157 = vshrl.u32 %v153, 16
    %v158 = vshll.u32 %v154, 16
    %v159 = vshrl.u32 %v154, 16
    %vm160 = vc.u32 %v152, %v156
    %v161 = vsel %vm160, 1, 0
    %v162 = vadd.s32 %v152, %v156
    %v163 = vadd.s32 %v155, %v161
    %vm164 = vc.u32 %v162, %v158
    %v165 = vsel %vm164, 1, 0
    %v166 = vadd.s32 %v162, %v158
    %v167 = vadd.s32 %v163, %v165
    %v168 = vadd.s32 %v167, %v157
    %v169 = vadd.s32 %v168, %v159
    %v170 = vand.u32 %v147, 65535
    %v171 = vshrl.u32 %v147, 16
    %v172 = vand.u32 %v142, 65535
    %v173 = vshrl.u32 %v142, 16
    %v174 = vmul.u32 %v170, %v172
    %v175 = vmul.u32 %v170, %v173
    %v176 = vmul.u32 %v171, %v172
    %v177 = vmul.u32 %v171, %v173
    %v178 = vshll.u32 %v175, 16
    %v179 = vshrl.u32 %v175, 16
    %v180 = vshll.u32 %v176, 16
    %v181 = vshrl.u32 %v176, 16
    %vm182 = vc.u32 %v174, %v178
    %v183 = vsel %vm182, 1, 0
    %v184 = vadd.s32 %v174, %v178
    %v185 = vadd.s32 %v177, %v183
    %vm186 = vc.u32 %v184, %v180
    %v187 = vsel %vm186, 1, 0
    %v188 = vadd.s32 %v184, %v180
    %v189 = vadd.s32 %v185, %v187
    %v190 = vadd.s32 %v189, %v179
    %v191 = vadd.s32 %v190, %v181
    %v192 = vmul.u32 %v147, %v138
    %v193 = vadd.s32 %v169, %v188
    %vm194 = vc.u32 %v169, %v188
    %v195 = vadd.s32 %v191, 1
    %v196 = vsel %vm194, %v195, %v191
    %v197 = vadd.s32 %v192, %v196
    %v198 = vadd.s32 %v197, 536870912
    %v199 = vshrl.u32 %v198, 30
    %v200 = vshll.u32 %v199, 30
    %v201 = vsub.s32 %v197, %v200
    %vm202 = vcmp.lt.s32.totalorder %v201, 0
    %v203 = vsub.s32 0, %v201
    %v204 = vsel %vm202, %v203, %v201
    %v205 = vclz %v204
    %v206 = vsub.s32 %v205, 2
    %vm207 = vcmp.gt.s32.totalorder 0, %v206
    %v208 = vsel %vm207, 0, %v206
    %v209 = vsub.s32 32, %v208
    %v210 = vshll.u32 %v201, %v208
    %v211 = vshrl.u32 %v193, %v209
    %v212 = vor.u32 %v210, %v211
    %v213 = vsub.s32 4294967266, %v208
    %v214 = vadd.s32 %v213, 127
    %v215 = vshll.u32 %v214, 23
    %v216 = vor.u32 4788187, %v215
    %v217 = vand.u32 2147483647, %v216
    %v219 = vcvt.s32.f32 %v212
    %v220 = vmul.f32 %v219, %v217
    %v221 = vxor.u32 %v220, 2147483648
    %v222 = vsel %vm101, %v221, %v220
    %v223 = vsub.s32 4, %v199
    %v224 = vsel %vm101, %v223, %v199
    %v225 = vsel %vm100, %v97, %v222
    %v226 = vsel %vm100, 0, %v224
    %v227 = vmul.f32 %v225, %v225
    %v228 = vmul.f32 %v227, -0.001358992
    %v229 = vadd.f32 %v228, 0.041655596
    %v230 = vmul.f32 %v227, %v229
    %v231 = vadd.f32 %v230, -0.4999988
    %v232 = vmul.f32 %v227, %v231
    %v233 = vadd.f32 1.0, %v232
    %v234 = vmul.f32 %v225, %v225
    %v235 = vmul.f32 %v234, -0.00019511016
    %v236 = vadd.f32 %v235, 0.008332121
    %v237 = vmul.f32 %v234, %v236
    %v238 = vadd.f32 %v237, -0.16666654
    %v239 = vmul.f32 %v234, %v238
    %v240 = vadd.f32 %v239, 1.0
    %v241 = vmul.f32 %v240, %v225
    %vm242 = vweird.f32 %v97
    %v243 = vand.u32 %v226, 3
    %vm244 = vcmp.lt.s32.totalorder %v243, 2
    %vm245 = vcmp.eq.s32.totalorder %v243, 0
    %v246 = vxor.u32 %v241, 2147483648
    %v247 = vsel %vm245, %v233, %v246
    %vm248 = vcmp.eq.s32.totalorder %v243, 2
    %v249 = vxor.u32 %v233, 2147483648
    %v250 = vsel %vm248, %v249, %v241
    %v251 = vsel %vm244, %v247, %v250
    %v252 = vsel %vm242, nan, %v251
    %v253 = vld [vmem:[#allocation2] sm:$0xff]
    %v254 = vld [vmem:[#allocation8] sm:$0xff]
    %v255 = vld [vmem:[#allocation8 + $0x8] sm:$0xff]
    %v256 = vld [vmem:[#allocation8 + $0x10] sm:$0xff]
    %v257 = vld [vmem:[#allocation8 + $0x18] sm:$0xff]
    %v258 = vld [vmem:[#allocation8 + $0x20] sm:$0xff]
    %v259 = vld [vmem:[#allocation8 + $0x28] sm:$0xff]
    %v260 = vld [vmem:[#allocation8 + $0x30] sm:$0xff]
    %v261 = vld [vmem:[#allocation8 + $0x38] sm:$0xff]
    %v262 = vld [vmem:[#allocation8 + $0x40] sm:$0xff]
    %v263 = vld [vmem:[#allocation8 + $0x48] sm:$0xff]
    %v264 = vld [vmem:[#allocation8 + $0x50] sm:$0xff]
    %v265 = vld [vmem:[#allocation8 + $0x58] sm:$0xff]
    %v266 = vld [vmem:[#allocation8 + $0x60] sm:$0xff]
    %v267 = vld [vmem:[#allocation8 + $0x68] sm:$0xff]
    %v268 = vld [vmem:[#allocation8 + $0x70] sm:$0xff]
    %v269 = vld [vmem:[#allocation8 + $0x78] sm:$0xff]
    %270 = vmatpush.msra.mxu0 %v269
    %271 = vmatpush.msra.mxu0 %v268
    %272 = vmatpush.msra.mxu0 %v267
    %273 = vmatpush.msra.mxu0 %v266
    %274 = vmatpush.msra.mxu0 %v265
    %275 = vmatpush.msra.mxu0 %v264
    %276 = vmatpush.msra.mxu0 %v263
    %277 = vmatpush.msra.mxu0 %v262
    %278 = vmatpush.msra.mxu0 %v261
    %279 = vmatpush.msra.mxu0 %v260
    %280 = vmatpush.msra.mxu0 %v259
    %281 = vmatpush.msra.mxu0 %v258
    %282 = vmatpush.msra.mxu0 %v257
    %283 = vmatpush.msra.mxu0 %v256
    %284 = vmatpush.msra.mxu0 %v255
    %285 = vmatpush.msra.mxu0 %v254
    %286 = vmatmul.f32.gmra.mxu0 %v252
    %v287 = vpop.f32.mrf.mxu0
    %v288 = vadd.f32 0.0, %v287
    %289 = vdwg.mxu0
    %v290 = vadd.f32 %v253, %v288
    %291 = vst [vmem:[#allocation2] sm:$0xff] %v290
    // Predicated region
    $region34: #{tpu_custom_call.1} parent=1 // pred_check
      %p292 = pneg %p63
    $region35: #{tpu_custom_call.1} parent=1 // pred_check_branch
      %294 = sbr.rel (%p292) target = $region37
    $region36: #{tpu_custom_call.1} parent=1 // pred_region
      %v295 = vld [vmem:[#allocation2] sm:$0xff]
      %296 = vst [vmem:[#allocation9] sm:$0xff] %v295
    $region37: #{tpu_custom_call.1} parent=1 // pred_fallthru
      _
    // Predicated region
    $region38: #{tpu_custom_call.1} parent=1 // pred_check
      _
    $region39: #{tpu_custom_call.1} parent=1 // pred_check_branch
      %298 = sbr.rel (0) target = $region41
    $region40: #{tpu_custom_call.1} parent=1 // pred_region
      %300 = vsyncadd [#allocation5], 0
      %s302 = sshll.u32 [#allocation9], 4
      %s303 = int_to_ptr.vmem [resolvable:$true] %s302
      %s304 = sshll.u32 %s4, 4
      %s305 = int_to_ptr.hbm [resolvable:$true] %s304
      %307 = dma.vmem_to_hbm [thread:$0]  %s303, 128, %s305, [#allocation5]
    $region41: #{tpu_custom_call.1} parent=1 // pred_fallthru
      _
    // Predicated region
    $region42: #{tpu_custom_call.1} parent=1 // pred_check
      _
    $region43: #{tpu_custom_call.1} parent=1 // pred_check_branch
      %309 = sbr.rel (0) target = $region45
    $region44: #{tpu_custom_call.1} parent=1 // pred_region
      %311 = dma.done [#allocation5], 128
    $region45: #{tpu_custom_call.1} parent=1 // pred_fallthru
      _
    %312 = vsyncpa [#allocation4], 1
    %313 = vsyncpa [#allocation7], 1
    %314 = vsyncpa [#allocation5], 1

</llo_original>
